<compile_context>
chip_gen: v5e
topology: v5e:2x2
jax: 0.10.0
libtpu: 0.0.40
codegen_flags: <defaults>
</compile_context>

<pallas_src>
import jax
import jax.numpy as jnp
from jax import lax
from jax.experimental import pallas as pl
from jax.experimental.pallas import tpu as pltpu

_LANES = 128
_SUB = 64                                # rows per vreg-resident inner slice (8 vregs f32)
_TARGET_BLOCK_BYTES = 2 * 1024 * 1024    # ~2 MiB DMA blocks (near HBM roofline)
_NUM_CORE_SLOTS = 2                      # leading 'parallel' axis (one per v7x TensorCore)


def _round_up(a, m):
    return ((a + m - 1) // m) * m


# ------------------------- shared elementwise loss --------------------------
def _elementwise(x, gan_mode, target_is_real, real_label, fake_label):
    """Per-element GAN loss (x already float32). Used by kernel, tail and ref."""
    if gan_mode == 'hinge':
        pre = (1.0 - x) if target_is_real else (1.0 + x)
        return jnp.maximum(pre, 0.0)
    t = real_label if target_is_real else fake_label
    if gan_mode == 'lsgan':
        d = x - t
        return d * d
    if gan_mode == 'vanilla':
        # Numerically stable BCEWithLogits (PyTorch form), kept in f32.
        return jnp.maximum(x, 0.0) - x * t + jnp.log1p(jnp.exp(-jnp.abs(x)))
    raise ValueError(f"unsupported gan_mode: {gan_mode}")


def _ref_single(x, target_is_real, gan_mode, real_label=1.0, fake_label=0.0):
    x = jnp.asarray(x).astype(jnp.float32)
    return jnp.mean(_elementwise(x, gan_mode, bool(target_is_real),
                                 float(real_label), float(fake_label)))


# ------------------------------ kernel --------------------------------------
def _make_gan_loss_kernel(gan_mode, target_is_real, real_label, fake_label,
                          block_rows, sub_rows, blocks_per_core, total_rows,
                          needs_mask):
    """Per-core accumulation of the elementwise loss into an (8,128) out block."""
    assert block_rows % sub_rows == 0 and sub_rows % 8 == 0
    n_sub = block_rows // sub_rows
    unroll = min(4, n_sub)

    def kernel(x_ref, out_ref):
        c = pl.program_id(0)     # core slot ('parallel' axis)
        i = pl.program_id(1)     # per-core block index ('arbitrary' axis)

        @pl.when(i == 0)
        def _():
            out_ref[...] = jnp.zeros_like(out_ref)   # (8,128) f32, resident across i

        def contrib(mask_row0):
            """Sum of the loss over this block folded to (8,128) (pure VPU fold).

            mask_row0=None -> fast unmasked path; otherwise it is the global row
            index of the block's first row and rows >= total_rows are dropped.
            """
            def one_slice(start):
                xs = x_ref[pl.ds(start, sub_rows), :].astype(jnp.float32)
                v = _elementwise(xs, gan_mode, target_is_real,
                                 real_label, fake_label)
                if mask_row0 is not None:
                    r = lax.broadcasted_iota(jnp.int32, v.shape, 0)
                    # select, NOT multiply: padded rows may hold NaN/Inf garbage.
                    v = jnp.where(mask_row0 + start + r < total_rows, v, 0.0)
                # (sub,128) -> (sub/8, 8, 128) is tile-aligned => layout-free.
                return jnp.sum(v.reshape(sub_rows // 8, 8, _LANES), axis=0)

            if n_sub == 1:
                return one_slice(0)

            def body(j, carry):
                start = pl.multiple_of(j * sub_rows, sub_rows)
                return carry + one_slice(start)

            return lax.fori_loop(0, n_sub, body,
                                 jnp.zeros((8, _LANES), jnp.float32),
                                 unroll=unroll)

        if needs_mask:
            g = c * blocks_per_core + i          # intended global block index
            row0 = g * block_rows                # first global row of this block
            is_full = row0 + block_rows <= total_rows

            @pl.when(is_full)
            def _():
                out_ref[...] += contrib(None)

            @pl.when(jnp.logical_not(is_full))
            def _():
                out_ref[...] += contrib(row0)
        else:
            out_ref[...] += contrib(None)

    return kernel


# ------------------------------ wrappers -------------------------------------
def gan_loss_single(x, target_is_real, gan_mode='hinge',
                    real_label=1.0, fake_label=0.0,
                    min_pallas_elements=131072):
    """Equivalent of GANLoss.forward_single — returns a 0-d scalar (mean loss)."""
    x = jnp.asarray(x)
    n = int(x.size)
    target_is_real = bool(target_is_real)
    real_label = float(real_label)
    fake_label = float(fake_label)

    if n == 0:
        # torch .mean() of an empty tensor is nan; avoid a divide-by-zero.
        return jnp.float32(float('nan'))

    rows = n // _LANES
    if n < min_pallas_elements or rows < 8:
        # Small/medium maps: XLA fuses elementwise+mean into the producing conv;
        # a pallas_call cannot fuse with its producer and pays launch overhead.
        return _ref_single(x, target_is_real, gan_mode, real_label, fake_label)

    flat = jnp.ravel(x)                    # native dtype; widened in-kernel
    rem = n % _LANES
    aligned = n - rem
    # No jnp.pad (full HBM re-write): lane-aligned prefix goes to Pallas, the
    # <=127-element ragged tail is summed in the wrapper.
    main = flat[:aligned] if rem else flat
    x2 = main.reshape(rows, _LANES)

    itemsize = jnp.dtype(x2.dtype).itemsize
    max_block_rows = max(_SUB, _TARGET_BLOCK_BYTES // (_LANES * itemsize))
    if rows >= 2 * _SUB:
        # Split the row range roughly in half across the two core slots, capped
        # at ~2 MiB per block; always a multiple of the 64-row inner slice.
        block_rows = min(max_block_rows, _round_up(pl.cdiv(rows, 2), _SUB))
        sub_rows = _SUB
    else:
        block_rows = 8
        sub_rows = 8

    total_blocks = pl.cdiv(rows, block_rows)
    blocks_per_core = pl.cdiv(total_blocks, _NUM_CORE_SLOTS)
    grid = (_NUM_CORE_SLOTS, blocks_per_core)
    covered_rows = _NUM_CORE_SLOTS * blocks_per_core * block_rows
    needs_mask = covered_rows != rows
    last_block = total_blocks - 1

    if _NUM_CORE_SLOTS * blocks_per_core > total_blocks:
        # The (at most one) surplus grid step re-maps onto the previous block
        # index -> its DMA is skipped; its contribution is masked to zero.
        def in_map(c, i):
            return (jnp.minimum(c * blocks_per_core + i, last_block), 0)
    else:
        def in_map(c, i):
            return (c * blocks_per_core + i, 0)

    kernel = _make_gan_loss_kernel(gan_mode, target_is_real, real_label,
                                   fake_label, block_rows, sub_rows,
                                   blocks_per_core, rows, needs_mask)

    n_trans = 2 * aligned if gan_mode == 'vanilla' else 0
    cost = pl.CostEstimate(
        flops=6 * aligned,
        transcendentals=n_trans,
        bytes_accessed=aligned * itemsize + _NUM_CORE_SLOTS * 8 * _LANES * 4)

    partials = pl.pallas_call(
        kernel,
        out_shape=jax.ShapeDtypeStruct((_NUM_CORE_SLOTS * 8, _LANES), jnp.float32),
        grid=grid,
        in_specs=[pl.BlockSpec((block_rows, _LANES), in_map)],
        out_specs=pl.BlockSpec((8, _LANES), lambda c, i: (c, 0)),
        compiler_params=pltpu.CompilerParams(
            dimension_semantics=("parallel", "arbitrary"),
            vmem_limit_bytes=32 * 1024 * 1024),
        cost_estimate=cost,
    )(x2)

    total = jnp.sum(partials)                       # combine per-core partials
    if rem:
        tail = flat[aligned:].astype(jnp.float32)   # <=127 elements, plain jnp
        total = total + jnp.sum(_elementwise(tail, gan_mode, target_is_real,
                                             real_label, fake_label))
    return total / n


def gan_loss(pred, target_is_real, gan_mode='hinge',
             real_label=1.0, fake_label=0.0):
    """Equivalent of GANLoss.forward (handles list-of-predictions input)."""
    if isinstance(pred, (list, tuple)):
        loss = jnp.zeros((1,), jnp.float32)
        for pred_i in pred:
            if isinstance(pred_i, (list, tuple)):
                pred_i = pred_i[-1]
            loss_tensor = gan_loss_single(pred_i, target_is_real, gan_mode,
                                          real_label, fake_label)
            # 0-d scalar => bs = 1, view(1,-1).mean(dim=1) -> shape (1,)
            loss = loss + jnp.reshape(loss_tensor, (1,))
        return loss / len(pred)
    return gan_loss_single(pred, target_is_real, gan_mode, real_label, fake_label)


# -------------------------------- demo ---------------------------------------
if __name__ == "__main__":
    import numpy as np

    key = jax.random.PRNGKey(0)
    k1, k2, k3, k4, k5 = jax.random.split(key, 5)
    ok = True

    def check(got, want, rtol=1e-5, atol=1e-5):
        return bool(np.allclose(np.asarray(got), np.asarray(want),
                                rtol=rtol, atol=atol))

    # 1) Small discriminator logits, NCHW — force the Pallas path at small shapes
    #    (default threshold would route these to the fused XLA path).
    x = jax.random.normal(k1, (2, 4, 16, 16), dtype=jnp.float32)
    for mode in ('hinge', 'lsgan', 'vanilla'):
        for tir in (True, False):
            got = jax.block_until_ready(
                gan_loss_single(x, tir, gan_mode=mode, min_pallas_elements=1))
            ok &= check(got, _ref_single(x, tir, mode))
    # Default threshold -> XLA fallback path, same value.
    got = jax.block_until_ready(gan_loss_single(x, True, gan_mode='hinge'))
    ok &= check(got, _ref_single(x, True, 'hinge'))

    # 2) Larger map — multi-block grid, 2-core-slot split, trailing partial +
    #    duplicated block masking (exercises the clamped index_map).
    xb = jax.random.normal(k2, (2, 4, 288, 512), dtype=jnp.float32)
    for mode in ('hinge', 'vanilla'):
        got = jax.block_until_ready(gan_loss_single(xb, True, gan_mode=mode))
        ok &= check(got, _ref_single(xb, True, mode), rtol=1e-4, atol=1e-5)

    # 3) Non-lane-aligned size — wrapper-side ragged tail (no jnp.pad).
    xo = jax.random.normal(k3, (3, 5, 7, 11), dtype=jnp.float32)
    got = jax.block_until_ready(
        gan_loss_single(xo, False, gan_mode='lsgan', min_pallas_elements=1))
    ok &= check(got, _ref_single(xo, False, 'lsgan'))

    # 4) bf16 logits — dtype-aware block size, widened to f32 in-kernel.
    xh = jax.random.normal(k4, (2, 4, 64, 128), dtype=jnp.bfloat16)
    got = jax.block_until_ready(
        gan_loss_single(xh, True, gan_mode='hinge', min_pallas_elements=1024))
    ok &= check(got, _ref_single(xh, True, 'hinge'), rtol=1e-4, atol=1e-5)

    # 5) Multi-scale discriminator style list input (with a nested list entry).
    pred_list = [
        jax.random.normal(k5, (2, 1, 64, 64), dtype=jnp.float32),
        [jax.random.normal(k2, (2, 1, 4, 4), dtype=jnp.float32)],
    ]
    got_list = jax.block_until_ready(gan_loss(pred_list, True, gan_mode='hinge'))
    want_list = (jnp.reshape(_ref_single(pred_list[0], True, 'hinge'), (1,)) +
                 jnp.reshape(_ref_single(pred_list[1][-1], True, 'hinge'), (1,))) / 2
    ok &= check(got_list, want_list)
    ok &= got_list.shape == (1,)

    if ok:
        print("KERNEL_OK")
    else:
        print("MISMATCH")
</pallas_src>

<mosaic_0001>
module attributes {stable_mosaic.version = 11 : i64} {
  func.func @kernel(%arg0: i32, %arg1: i32, %arg2: memref<8x128xf32, #tpu.memory_space<vmem>>, %arg3: memref<8x128xf32, #tpu.memory_space<vmem>>) attributes {dimension_semantics = [#tpu.dimension_semantics<parallel>, #tpu.dimension_semantics<arbitrary>], iteration_bounds = array<i64: 2, 1>, scalar_prefetch = 0 : i64, scratch_operands = 0 : i64, tpu.core_type = #tpu.core_type<tc>, window_params = [{transform_indices = @transform_0, window_bounds = array<i64: 8, 128>}, {transform_indices = @transform_1, window_bounds = array<i64: 8, 128>}]} {
    %c0_i32 = arith.constant 0 : i32
    %0 = arith.cmpi eq, %arg1, %c0_i32 : i32
    %1 = arith.extui %0 : i1 to i32
    %c0_i32_0 = arith.constant 0 : i32
    %2 = arith.cmpi ne, %1, %c0_i32_0 : i32
    scf.if %2 {
      %cst_8 = arith.constant 0.000000e+00 : f32
      %13 = vector.broadcast %cst_8 : f32 to vector<8x128xf32>
      %c0_9 = arith.constant 0 : index
      %c0_10 = arith.constant 0 : index
      %14 = vector.load %arg3[%c0_9, %c0_10] : memref<8x128xf32, #tpu.memory_space<vmem>>, vector<8x128xf32>
      tpu.vector_store %arg3[%c0_9, %c0_10], %13 {strides = array<i32>} : memref<8x128xf32, #tpu.memory_space<vmem>>, vector<8x128xf32>,
    } else {
    }
    %c0 = arith.constant 0 : index
    %c0_1 = arith.constant 0 : index
    %3 = vector.load %arg3[%c0, %c0_1] : memref<8x128xf32, #tpu.memory_space<vmem>>, vector<8x128xf32>
    %c0_2 = arith.constant 0 : index
    %c0_3 = arith.constant 0 : index
    %4 = vector.load %arg2[%c0_2, %c0_3] : memref<8x128xf32, #tpu.memory_space<vmem>>, vector<8x128xf32>
    %cst = arith.constant 1.000000e+00 : f32
    %5 = vector.broadcast %cst : f32 to vector<8x128xf32>
    %6 = arith.subf %5, %4 : vector<8x128xf32>
    %cst_4 = arith.constant 0.000000e+00 : f32
    %7 = vector.broadcast %cst_4 : f32 to vector<8x128xf32>
    %8 = arith.maximumf %6, %7 : vector<8x128xf32>
    %9 = vector.shape_cast %8 : vector<8x128xf32> to vector<1x8x128xf32>
    %cst_5 = arith.constant dense<0.000000e+00> : vector<8x128xf32>
    %10 = vector.multi_reduction <add>, %9, %cst_5 [0] : vector<1x8x128xf32> to vector<8x128xf32>
    %11 = arith.addf %3, %10 : vector<8x128xf32>
    %c0_6 = arith.constant 0 : index
    %c0_7 = arith.constant 0 : index
    %12 = vector.load %arg3[%c0_6, %c0_7] : memref<8x128xf32, #tpu.memory_space<vmem>>, vector<8x128xf32>
    tpu.vector_store %arg3[%c0_6, %c0_7], %11 {strides = array<i32>} : memref<8x128xf32, #tpu.memory_space<vmem>>, vector<8x128xf32>,
    return
  }
  func.func @transform_0(%arg0: i32, %arg1: i32) -> (i32, i32) {
    %c1_i32 = arith.constant 1 : i32
    %0 = arith.muli %arg0, %c1_i32 : i32
    %1 = arith.addi %0, %arg1 : i32
    %c0_i32 = arith.constant 0 : i32
    %c0_i32_0 = arith.constant 0 : i32
    return %1, %c0_i32 : i32, i32
  }
  func.func @transform_1(%arg0: i32, %arg1: i32) -> (i32, i32) {
    %c0_i32 = arith.constant 0 : i32
    %c0_i32_0 = arith.constant 0 : i32
    return %arg0, %c0_i32 : i32, i32
  }
}

</mosaic_0001>

<llo_original>
// kernel: tpu_custom_call.1
$region0: #{tpu_custom_call.1}
  #allocation0 [shape = 'u32[]', space=smem, size = 0x4, offset = 0x4, fixed_abs, tag = 'smem constant byte address 0x4 - core index']
  #allocation1 [shape = 'u32[72,128]{1,0:T(1,128)}', space=vmem, size = 0x9000, scoped, tag = 'internal scratch']
  %s0 = inlined_call_operand.hbm [shape: f32[16,128], index: 0, kind: input, shape index: {}]
  %s1 = inlined_call_operand.hbm [shape: f32[16,128], index: 1, kind: output, shape index: {}]
  %s2 = sld [smem:[#allocation0]]
  $region45: #{tpu_custom_call.1} parent=0
    _
  %s4 = ssub.s32 1, %s2
  %s5 = scalar_select 0, %s4, %s2
  $region1: #{tpu_custom_call.1} parent=0
    #allocation2 [shape = 'u8[8192]{0}', space=vmem, size = 0x2000, scoped, tag = 'input window, operand 0']
    #allocation3 [shape = 's32[2]{0}', space=sflag, size = 0x8, scoped, tag = 'scoped memory for tpu_custom_call.1']
    #allocation4 [shape = 's32[2]{0}', space=sflag, size = 0x8, scoped, tag = 'scoped memory for tpu_custom_call.1']
    #allocation5 [shape = 'u8[8192]{0}', space=vmem, size = 0x2000, scoped, tag = 'output window, operand 0']
    %6 = vsyncpa [#allocation3], 0
    %s7 = scalar_lea.sflag [#allocation3], 1
    %8 = vsyncpa %s7, 0
    %9 = vsyncpa [#allocation4], 0
    %s10 = scalar_lea.sflag [#allocation4], 1
    %11 = vsyncpa %s10, 0
    loop: start=0, step=1, limit=4
    $region2: #{tpu_custom_call.1} parent=1 // loop_pre_header
      _
    $region3: #{tpu_custom_call.1} parent=1 // loop_header
      %s13 = sphi 0, %s17
      %p14 = scmp.ge.s32.totalorder %s13, 4
      %s20 = sphi 0, %s32
      %s21 = sphi 0, %s28
      %s22 = sphi 0, %s20
      %s23 = sphi 0, %s21
      %s24 = sphi 0, %s22
      %s25 = sphi 0, %s23
      %s37 = sphi 0, %s39
      %s40 = sphi 0, %s37
      %s41 = sphi 0, %s40
      %s57 = sphi 0, %s41
      %s63 = sphi 0, %s65
      %s66 = sphi 0, %s63
      %s67 = sphi 0, %s66
      %s83 = sphi 0, %s67
    $region4: #{tpu_custom_call.1} parent=1 // loop_header_branch
      %16 = sbr.rel (%p14) target = $region8
    $region5: #{tpu_custom_call.1} parent=1 // loop_body
      %s18 = ssub.s32 %s13, 1
      %s19 = ssub.s32 %s13, 2
      %s26 = sadd.s32 1, %s21
      %p27 = scmp.ge.s32.totalorder %s26, 1
      %s28 = scalar_select %p27, 0, %s26
      %s29 = sadd.s32 1, %s20
      %s30 = scalar_select %p27, %s29, %s20
      %p31 = scmp.ge.s32.totalorder %s30, 2
      %s32 = scalar_select %p31, 0, %s30
      %s33 = sadd.s32 %s20, %s21
      %s34 = sadd.s32 %s32, %s28
      %s35 = ssub.s32 %s33, %s34
      %p36 = scmp.eq.s32.totalorder %s35, 0
      %s38 = sadd.s32 %s37, 1
      %s39 = scalar_select %p36, %s37, %s38
      %p42 = pneg %p36
      %p43 = scmp.eq.s32.totalorder %s13, 1
      %p44 = por %p42, %p43
      %p45 = scmp.ne.s32.totalorder %s37, %s40
      %p46 = scmp.eq.s32.totalorder %s13, 0
      %p47 = por %p45, %p46
      %p48 = scmp.ne.s32.totalorder %s37, %s40
      %p49 = scmp.eq.s32.totalorder %s18, 1
      %p50 = por %p48, %p49
      %p51 = scmp.ne.s32.totalorder %s40, %s41
      %p52 = scmp.eq.s32.totalorder %s18, 0
      %p53 = por %p51, %p52
      %p54 = scmp.ne.s32.totalorder %s40, %s41
      %p55 = scmp.eq.s32.totalorder %s19, 1
      %p56 = por %p54, %p55
      %p58 = scmp.ne.s32.totalorder %s41, %s57
      %p59 = scmp.eq.s32.totalorder %s19, 0
      %p60 = por %p58, %p59
      %s61 = ssub.s32 %s20, %s32
      %p62 = scmp.eq.s32.totalorder %s61, 0
      %s64 = sadd.s32 %s63, 1
      %s65 = scalar_select %p62, %s63, %s64
      %p68 = pneg %p62
      %p69 = scmp.eq.s32.totalorder %s13, 1
      %p70 = por %p68, %p69
      %p71 = scmp.ne.s32.totalorder %s63, %s66
      %p72 = scmp.eq.s32.totalorder %s13, 0
      %p73 = por %p71, %p72
      %p74 = scmp.ne.s32.totalorder %s63, %s66
      %p75 = scmp.eq.s32.totalorder %s18, 1
      %p76 = por %p74, %p75
      %p77 = scmp.ne.s32.totalorder %s66, %s67
      %p78 = scmp.eq.s32.totalorder %s18, 0
      %p79 = por %p77, %p78
      %p80 = scmp.ne.s32.totalorder %s66, %s67
      %p81 = scmp.eq.s32.totalorder %s19, 1
      %p82 = por %p80, %p81
      %p84 = scmp.ne.s32.totalorder %s67, %s83
      %p85 = scmp.eq.s32.totalorder %s19, 0
      %p86 = por %p84, %p85
      %p87 = scmp.le.s32.totalorder 1, %s13
      %p88 = scmp.lt.s32.totalorder %s13, 3
      %p89 = pnand %p87, %p88
      %p90 = pneg %p89
      // Predicated region
      $region9: #{tpu_custom_call.1} parent=5 // pred_check
        _
      $region10: #{tpu_custom_call.1} parent=5 // pred_check_branch
        %92 = sbr.rel (%p89) target = $region12
      $region11: #{tpu_custom_call.1} parent=5 // pred_region
        %s93 = ssub.s32 %s13, 1
      $region12: #{tpu_custom_call.1} parent=5 // pred_fallthru
        _
      %p94 = scmp.lt.s32.totalorder %s13, 2
      // Predicated region
      $region13: #{tpu_custom_call.1} parent=5 // pred_check
        %p95 = pneg %p94
      $region14: #{tpu_custom_call.1} parent=5 // pred_check_branch
        %97 = sbr.rel (%p95) target = $region16
      $region15: #{tpu_custom_call.1} parent=5 // pred_region
        // Predicated region
        $region17: #{tpu_custom_call.1} parent=15 // pred_check
          %p98 = pneg %p47
        $region18: #{tpu_custom_call.1} parent=15 // pred_check_branch
          %100 = sbr.rel (%p98) target = $region20
        $region19: #{tpu_custom_call.1} parent=15 // pred_region
          %s101 = sand.u32 %s37, 1
          %s102 = scalar_lea.sflag [#allocation3], %s101
          %s103 = sand.u32 %s37, 1
          %s104 = smul.addr %s103, 8
          %s105 = scalar_lea.vmem [#allocation2], %s104
          %s106 = sadd.s32 %s20, %s21
          %108 = vsyncadd %s102, 0
          %s109 = smul.addr %s106, 8
          %s110 = scalar_lea.hbm %s0, %s109
          %s112 = sshll.u32 %s110, 4
          %s113 = int_to_ptr.hbm [resolvable:$true] %s112
          %s114 = sshll.u32 %s105, 4
          %s115 = int_to_ptr.vmem [resolvable:$true] %s114
          %117 = dma.hbm_to_vmem [thread:$0]  %s113, 128, %s115, %s102
        $region20: #{tpu_custom_call.1} parent=15 // pred_fallthru
          _
      $region16: #{tpu_custom_call.1} parent=5 // pred_fallthru
        _
      %p118 = scmp.le.s32.totalorder 1, %s13
      %p119 = scmp.lt.s32.totalorder %s13, 3
      %p120 = pnand %p118, %p119
      %p121 = pneg %p120
      // Predicated region
      $region21: #{tpu_custom_call.1} parent=5 // pred_check
        _
      $region22: #{tpu_custom_call.1} parent=5 // pred_check_branch
        %123 = sbr.rel (%p120) target = $region24
      $region23: #{tpu_custom_call.1} parent=5 // pred_region
        %s124 = ssub.s32 %s13, 1
        %s125 = sand.u32 %s40, 1
        %s126 = scalar_lea.sflag [#allocation3], %s125
        %s127 = sand.u32 %s40, 1
        %s128 = smul.addr %s127, 8
        %s129 = scalar_lea.vmem [#allocation2], %s128
        // Predicated region
        $region25: #{tpu_custom_call.1} parent=23 // pred_check
          %p130 = pneg %p53
        $region26: #{tpu_custom_call.1} parent=23 // pred_check_branch
          %132 = sbr.rel (%p130) target = $region28
        $region27: #{tpu_custom_call.1} parent=23 // pred_region
          %134 = dma.done %s126, 128
        $region28: #{tpu_custom_call.1} parent=23 // pred_fallthru
          _
        %s135 = sand.u32 %s40, 1
        %s136 = scalar_lea.sflag [#allocation3], %s135
        %s137 = sand.u32 %s40, 1
        %s138 = smul.addr %s137, 8
        %s139 = scalar_lea.vmem [#allocation2], %s138
        %p140 = pneg %p53
        %p141 = pneg %p50
        %p142 = pneg %p79
        %p143 = pneg %p76
        %s144 = sand.u32 %s66, 1
        %s145 = scalar_lea.sflag [#allocation4], %s144
        %s146 = sand.u32 %s66, 1
        %s147 = smul.addr %s146, 8
        %s148 = scalar_lea.vmem [#allocation5], %s147
        %s149 = sadd.s32 %s22, %s23
        %p150 = scmp.eq.s32.totalorder %s23, 0
        // Predicated region
        $region29: #{tpu_custom_call.1} parent=23 // pred_check
          %p151 = pneg %p150
        $region30: #{tpu_custom_call.1} parent=23 // pred_check_branch
          %153 = sbr.rel (%p151) target = $region32
        $region31: #{tpu_custom_call.1} parent=23 // pred_region
          %154 = vst [vmem:[%s148] sm:$0xff] 0.0
        $region32: #{tpu_custom_call.1} parent=23 // pred_fallthru
          _
        %v155 = vld [vmem:[%s148] sm:$0xff]
        %v156 = vld [vmem:[%s129] sm:$0xff]
        %v157 = vsub.f32 1.0, %v156
        %v158 = vmax.f32 %v157, 0.0
        %v159 = vadd.f32 %v158, 0.0
        %v160 = vadd.f32 %v155, %v159
        %161 = vst [vmem:[%s148] sm:$0xff] %v160
        %s162 = sand.u32 %s66, 1
        %s163 = scalar_lea.sflag [#allocation4], %s162
        %s164 = sand.u32 %s66, 1
        %s165 = smul.addr %s164, 8
        %s166 = scalar_lea.vmem [#allocation5], %s165
        // Predicated region
        $region33: #{tpu_custom_call.1} parent=23 // pred_check
          %p167 = pneg %p76
        $region34: #{tpu_custom_call.1} parent=23 // pred_check_branch
          %169 = sbr.rel (%p167) target = $region36
        $region35: #{tpu_custom_call.1} parent=23 // pred_region
          %171 = vsyncadd %s163, 0
          %s172 = smul.addr %s22, 8
          %s173 = scalar_lea.hbm %s1, %s172
          %s175 = sshll.u32 %s166, 4
          %s176 = int_to_ptr.vmem [resolvable:$true] %s175
          %s177 = sshll.u32 %s173, 4
          %s178 = int_to_ptr.hbm [resolvable:$true] %s177
          %180 = dma.vmem_to_hbm [thread:$0]  %s176, 128, %s178, %s163
        $region36: #{tpu_custom_call.1} parent=23 // pred_fallthru
          _
      $region24: #{tpu_custom_call.1} parent=5 // pred_fallthru
        _
      %p181 = scmp.le.s32.totalorder 2, %s13
      // Predicated region
      $region37: #{tpu_custom_call.1} parent=5 // pred_check
        %p182 = pneg %p181
      $region38: #{tpu_custom_call.1} parent=5 // pred_check_branch
        %184 = sbr.rel (%p182) target = $region40
      $region39: #{tpu_custom_call.1} parent=5 // pred_region
        %s185 = ssub.s32 %s13, 2
        // Predicated region
        $region41: #{tpu_custom_call.1} parent=39 // pred_check
          %p186 = pneg %p82
        $region42: #{tpu_custom_call.1} parent=39 // pred_check_branch
          %188 = sbr.rel (%p186) target = $region44
        $region43: #{tpu_custom_call.1} parent=39 // pred_region
          %s189 = sand.u32 %s67, 1
          %s190 = scalar_lea.sflag [#allocation4], %s189
          %s191 = sand.u32 %s67, 1
          %s192 = smul.addr %s191, 8
          %s193 = scalar_lea.vmem [#allocation5], %s192
          %195 = dma.done %s190, 128
        $region44: #{tpu_custom_call.1} parent=39 // pred_fallthru
          _
      $region40: #{tpu_custom_call.1} parent=5 // pred_fallthru
        _
    $region6: #{tpu_custom_call.1} parent=1 // loop_footer
      %s17 = sadd.s32 1, %s13
    $region7: #{tpu_custom_call.1} parent=1 // loop_footer_branch
      %12 = sbr.rel target = $region3
    $region8: #{tpu_custom_call.1} parent=1 // loop_exit
      _
    %196 = vsyncpa [#allocation3], 1
    %s197 = scalar_lea.sflag [#allocation3], 1
    %198 = vsyncpa %s197, 1
    %199 = vsyncpa [#allocation4], 1
    %s200 = scalar_lea.sflag [#allocation4], 1
    %201 = vsyncpa %s200, 1

</llo_original>
